<compile_context>
chip_gen: v5e
topology: v5e:2x2
jax: 0.10.0
libtpu: 0.0.40
codegen_flags: <defaults>
</compile_context>

<pallas_src>
import jax
import jax.numpy as jnp
from jax.experimental import pallas as pl
from jax.experimental.pallas import tpu as pltpu

N_PAD = 128  # lane-dense padded output width (>= 10 real classes)


def mlp_kernel(x_ref, w1_ref, b1_ref, w2_ref, b2_ref, out_ref):
    # x_ref:  (TB, 784)    w1_ref: (784, 256)   b1_ref: (1, 256)
    # w2_ref: (256, 128)   b2_ref: (1, 128)     out_ref: (TB, 128)
    x = x_ref[...]

    # hidden = sigmoid(x @ W1 + b1)
    h = jnp.dot(x, w1_ref[...], preferred_element_type=jnp.float32) + b1_ref[...]
    h = jax.nn.sigmoid(h)

    # logits over a lane-dense 128-wide tile (pad cols have bias -1e30 -> exp == 0)
    logits = jnp.dot(h, w2_ref[...], preferred_element_type=jnp.float32) + b2_ref[...]

    # numerically stable softmax along the last axis
    m = jnp.max(logits, axis=-1, keepdims=True)
    e = jnp.exp(logits - m)
    denom = jnp.sum(e, axis=-1, keepdims=True)
    # exact reciprocal keeps sum-to-1 / parity checks at 1e-5 tight
    out_ref[...] = (e * pl.reciprocal(denom, approx=False)).astype(out_ref.dtype)


def _round_up(v, m):
    return ((v + m - 1) // m) * m


def _pick_batch_tile(B, max_tile=512):
    """Batch tile: multiple of 8 sublanes, capped at max_tile rows.

    max_tile=512 is a multiple of 256 (v6e/v7x MXU width) and 128 (v5e MXU).
    For mid-size batches that would otherwise fit in one tile, split into two
    so the 'parallel' grid axis can shard across v7x's two TensorCores.
    """
    tb = min(max_tile, _round_up(B, 8))
    if B > 256 and pl.cdiv(B, tb) < 2:
        tb = _round_up(pl.cdiv(B, 2), 128)
    return tb


def pad_output_layer(w2, b2):
    """Pad W2/b2 to a lane-dense 128-col tile. Call ONCE at init, not per-forward."""
    hid, n_out = w2.shape
    w2p = jnp.zeros((hid, N_PAD), jnp.float32).at[:, :n_out].set(w2)
    b2p = jnp.full((1, N_PAD), -1e30, jnp.float32).at[:, :n_out].set(b2)
    return w2p, b2p


def network_forward(x, w1, b1, w2p, b2p, *, n_out=10, max_tile=512):
    B, d_in = x.shape
    hid = w1.shape[1]

    tb = _pick_batch_tile(B, max_tile)
    # Ragged trailing block: no wrapper-side jnp.pad of x (rows are independent;
    # out-of-range rows in the last block are never written back by Pallas).
    grid = (pl.cdiv(B, tb),)

    out = pl.pallas_call(
        mlp_kernel,
        out_shape=jax.ShapeDtypeStruct((B, N_PAD), jnp.float32),
        grid_spec=pl.GridSpec(
            grid=grid,
            in_specs=[
                # batch-tiled activation: double-buffered across grid steps
                pl.BlockSpec((tb, d_in), lambda i: (i, 0)),
                # weights/biases: constant index map -> VMEM-resident
                pl.BlockSpec((d_in, hid), lambda i: (0, 0)),
                pl.BlockSpec((1, hid), lambda i: (0, 0)),
                pl.BlockSpec((hid, N_PAD), lambda i: (0, 0)),
                pl.BlockSpec((1, N_PAD), lambda i: (0, 0)),
            ],
            out_specs=pl.BlockSpec((tb, N_PAD), lambda i: (i, 0)),
        ),
        compiler_params=pltpu.CompilerParams(
            # batch tiles are independent -> parallel (sharded across TCs on v7x)
            dimension_semantics=("parallel",),
            # tb=512 needs ~6-8 MiB (double-buffered x + resident weights +
            # intermediates); 32 MiB leaves headroom and overrides v5e's 16 MiB
            # scoped default while staying well under v7x's 64 MiB VMEM.
            vmem_limit_bytes=32 * 1024 * 1024,
        ),
    )(x, w1, b1, w2p, b2p)

    # Drop the 118 lane-pad columns.  This is one small extra XLA copy
    # (~40 B/row vs the 3136 B/row x stream); downstream consumers that can
    # read the padded (B, 128) slab lazily should take `out` directly.
    return out[:, :n_out]


def init_params(key):
    # Deterministic init mimicking nn.Linear's U(-1/sqrt(fan_in), 1/sqrt(fan_in)).
    k1, k2, k3, k4 = jax.random.split(key, 4)
    bound1 = 1.0 / jnp.sqrt(784.0)
    bound2 = 1.0 / jnp.sqrt(256.0)
    # Stored as (in, out) == transpose of PyTorch's (out, in) weight layout.
    w1 = jax.random.uniform(k1, (784, 256), jnp.float32, -bound1, bound1)
    b1 = jax.random.uniform(k2, (1, 256), jnp.float32, -bound1, bound1)
    w2 = jax.random.uniform(k3, (256, 10), jnp.float32, -bound2, bound2)
    b2 = jax.random.uniform(k4, (1, 10), jnp.float32, -bound2, bound2)
    return w1, b1, w2, b2


def reference_forward(x, w1, b1, w2, b2):
    h = jax.nn.sigmoid(x @ w1 + b1)
    return jax.nn.softmax(h @ w2 + b2, axis=1)


if __name__ == "__main__":
    key = jax.random.PRNGKey(0)
    kx, kp = jax.random.split(key)
    B = 8
    x = jax.random.normal(kx, (B, 784), jnp.float32)
    w1, b1, w2, b2 = init_params(kp)

    # Lane-padding of the output layer is done once here, outside the forward.
    w2p, b2p = pad_output_layer(w2, b2)

    out = network_forward(x, w1, b1, w2p, b2p, n_out=10)
    out = jax.block_until_ready(out)

    ref = reference_forward(x, w1, b1, w2, b2)
    assert out.shape == (B, 10)
    assert jnp.allclose(jnp.sum(out, axis=1), 1.0, atol=1e-5)
    assert jnp.allclose(out, ref, atol=1e-5, rtol=1e-5)
    print("KERNEL_OK")
</pallas_src>

<mosaic_0001>
module attributes {stable_mosaic.version = 11 : i64} {
  func.func @mlp_kernel(%arg0: i32, %arg1: memref<8x784xf32, #tpu.memory_space<vmem>>, %arg2: memref<784x256xf32, #tpu.memory_space<vmem>>, %arg3: memref<1x256xf32, #tpu.memory_space<vmem>>, %arg4: memref<256x128xf32, #tpu.memory_space<vmem>>, %arg5: memref<1x128xf32, #tpu.memory_space<vmem>>, %arg6: memref<8x128xf32, #tpu.memory_space<vmem>>) attributes {dimension_semantics = [#tpu.dimension_semantics<parallel>], iteration_bounds = array<i64: 1>, scalar_prefetch = 0 : i64, scratch_operands = 0 : i64, tpu.core_type = #tpu.core_type<tc>, window_params = [{transform_indices = @transform_0, window_bounds = array<i64: 8, 784>}, {pipeline_mode = #tpu.pipeline_mode<synchronous>, transform_indices = @transform_1, window_bounds = array<i64: 784, 256>}, {pipeline_mode = #tpu.pipeline_mode<synchronous>, transform_indices = @transform_2, window_bounds = array<i64: 1, 256>}, {pipeline_mode = #tpu.pipeline_mode<synchronous>, transform_indices = @transform_3, window_bounds = array<i64: 256, 128>}, {pipeline_mode = #tpu.pipeline_mode<synchronous>, transform_indices = @transform_4, window_bounds = array<i64: 1, 128>}, {transform_indices = @transform_5, window_bounds = array<i64: 8, 128>}]} {
    %c0 = arith.constant 0 : index
    %c0_0 = arith.constant 0 : index
    %0 = vector.load %arg1[%c0, %c0_0] : memref<8x784xf32, #tpu.memory_space<vmem>>, vector<8x784xf32>
    %c0_1 = arith.constant 0 : index
    %c0_2 = arith.constant 0 : index
    %1 = vector.load %arg2[%c0_1, %c0_2] : memref<784x256xf32, #tpu.memory_space<vmem>>, vector<784x256xf32>
    %cst = arith.constant dense<0.000000e+00> : vector<8x256xf32>
    %2 = tpu.matmul %0, %1, %cst {dimension_numbers = #tpu.dot_dimension_numbers<[1], [0], [0], [1], [0, 0, 1, 1], [], []>} : vector<8x784xf32>, vector<784x256xf32>, vector<8x256xf32> -> vector<8x256xf32>
    %c0_3 = arith.constant 0 : index
    %c0_4 = arith.constant 0 : index
    %3 = vector.load %arg3[%c0_3, %c0_4] : memref<1x256xf32, #tpu.memory_space<vmem>>, vector<1x256xf32>
    %4 = vector.broadcast %3 : vector<1x256xf32> to vector<8x256xf32>
    %5 = arith.addf %2, %4 : vector<8x256xf32>
    %6 = arith.negf %5 : vector<8x256xf32>
    %7 = math.exp %6 : vector<8x256xf32>
    %cst_5 = arith.constant 1.000000e+00 : f32
    %8 = vector.broadcast %cst_5 : f32 to vector<8x256xf32>
    %9 = arith.addf %8, %7 : vector<8x256xf32>
    %10 = arith.divf %8, %9 : vector<8x256xf32>
    %c0_6 = arith.constant 0 : index
    %c0_7 = arith.constant 0 : index
    %11 = vector.load %arg4[%c0_6, %c0_7] : memref<256x128xf32, #tpu.memory_space<vmem>>, vector<256x128xf32>
    %cst_8 = arith.constant dense<0.000000e+00> : vector<8x128xf32>
    %12 = tpu.matmul %10, %11, %cst_8 {dimension_numbers = #tpu.dot_dimension_numbers<[1], [0], [0], [1], [0, 0, 1, 1], [], []>} : vector<8x256xf32>, vector<256x128xf32>, vector<8x128xf32> -> vector<8x128xf32>
    %c0_9 = arith.constant 0 : index
    %c0_10 = arith.constant 0 : index
    %13 = vector.load %arg5[%c0_9, %c0_10] : memref<1x128xf32, #tpu.memory_space<vmem>>, vector<1x128xf32>
    %14 = vector.broadcast %13 : vector<1x128xf32> to vector<8x128xf32>
    %15 = arith.addf %12, %14 : vector<8x128xf32>
    %cst_11 = arith.constant dense<0xFF800000> : vector<8xf32>
    %16 = vector.multi_reduction <maximumf>, %15, %cst_11 [1] : vector<8x128xf32> to vector<8xf32>
    %17 = vector.shape_cast %16 : vector<8xf32> to vector<8x1xf32>
    %18 = vector.broadcast %17 : vector<8x1xf32> to vector<8x128xf32>
    %19 = arith.subf %15, %18 : vector<8x128xf32>
    %20 = math.exp %19 : vector<8x128xf32>
    %cst_12 = arith.constant dense<0.000000e+00> : vector<8xf32>
    %21 = vector.multi_reduction <add>, %20, %cst_12 [1] : vector<8x128xf32> to vector<8xf32>
    %22 = vector.shape_cast %21 : vector<8xf32> to vector<8x1xf32>
    %23 = tpu.reciprocal %22 : vector<8x1xf32> -> vector<8x1xf32>
    %24 = vector.broadcast %23 : vector<8x1xf32> to vector<8x128xf32>
    %25 = arith.mulf %20, %24 : vector<8x128xf32>
    %c0_13 = arith.constant 0 : index
    %c0_14 = arith.constant 0 : index
    %26 = vector.load %arg6[%c0_13, %c0_14] : memref<8x128xf32, #tpu.memory_space<vmem>>, vector<8x128xf32>
    tpu.vector_store %arg6[%c0_13, %c0_14], %25 {strides = array<i32>} : memref<8x128xf32, #tpu.memory_space<vmem>>, vector<8x128xf32>,
    return
  }
  func.func @transform_0(%arg0: i32) -> (i32, i32) {
    %c0_i32 = arith.constant 0 : i32
    %c0_i32_0 = arith.constant 0 : i32
    return %arg0, %c0_i32 : i32, i32
  }
  func.func @transform_1(%arg0: i32) -> (i32, i32) {
    %c0_i32 = arith.constant 0 : i32
    %c0_i32_0 = arith.constant 0 : i32
    %c0_i32_1 = arith.constant 0 : i32
    return %c0_i32, %c0_i32_0 : i32, i32
  }
  func.func @transform_2(%arg0: i32) -> (i32, i32) {
    %c0_i32 = arith.constant 0 : i32
    %c0_i32_0 = arith.constant 0 : i32
    %c0_i32_1 = arith.constant 0 : i32
    return %c0_i32, %c0_i32_0 : i32, i32
  }
  func.func @transform_3(%arg0: i32) -> (i32, i32) {
    %c0_i32 = arith.constant 0 : i32
    %c0_i32_0 = arith.constant 0 : i32
    %c0_i32_1 = arith.constant 0 : i32
    return %c0_i32, %c0_i32_0 : i32, i32
  }
  func.func @transform_4(%arg0: i32) -> (i32, i32) {
    %c0_i32 = arith.constant 0 : i32
    %c0_i32_0 = arith.constant 0 : i32
    %c0_i32_1 = arith.constant 0 : i32
    return %c0_i32, %c0_i32_0 : i32, i32
  }
  func.func @transform_5(%arg0: i32) -> (i32, i32) {
    %c0_i32 = arith.constant 0 : i32
    %c0_i32_0 = arith.constant 0 : i32
    return %arg0, %c0_i32 : i32, i32
  }
}

</mosaic_0001>

<llo_original>
// kernel: tpu_custom_call.1
$region0: #{tpu_custom_call.1}
  #allocation0 [shape = 'u32[]', space=smem, size = 0x4, offset = 0x4, fixed_abs, tag = 'smem constant byte address 0x4 - core index']
  #allocation1 [shape = 'u32[72,128]{1,0:T(1,128)}', space=vmem, size = 0x9000, scoped, tag = 'internal scratch']
  %s0 = inlined_call_operand.hbm [shape: f32[8,784], index: 0, kind: input, shape index: {}]
  %s1 = inlined_call_operand.hbm [shape: f32[784,256], index: 1, kind: input, shape index: {}]
  %s2 = inlined_call_operand.hbm [shape: f32[1,256], index: 2, kind: input, shape index: {}]
  %s3 = inlined_call_operand.hbm [shape: f32[256,128], index: 3, kind: input, shape index: {}]
  %s4 = inlined_call_operand.vmem [shape: f32[1,128], index: 4, kind: input, shape index: {}]
  %s5 = inlined_call_operand.hbm [shape: f32[8,128], index: 5, kind: output, shape index: {}]
  %s6 = sld [smem:[#allocation0]]
  $region46: #{tpu_custom_call.1} parent=0
    _
  %s8 = ssub.s32 1, %s6
  %s9 = scalar_select 0, %s8, %s6
  $region1: #{tpu_custom_call.1} parent=0
    #allocation2 [shape = 'u8[28672]{0}', space=vmem, size = 0x7000, scoped, tag = 'input window, operand 0, single buffered']
    #allocation3 [shape = 's32[1]{0}', space=sflag, size = 0x4, scoped, tag = 'scoped memory for tpu_custom_call.1']
    #allocation4 [shape = 's32[1]{0}', space=sflag, size = 0x4, scoped, tag = 'scoped memory for tpu_custom_call.1']
    #allocation5 [shape = 'u8[802816]{0}', space=vmem, size = 0xc4000, scoped, tag = 'input window, operand 1, single buffered']
    #allocation6 [shape = 's32[1]{0}', space=sflag, size = 0x4, scoped, tag = 'scoped memory for tpu_custom_call.1']
    #allocation7 [shape = 'u8[1024]{0}', space=vmem, size = 0x400, scoped, tag = 'input window, operand 2, single buffered']
    #allocation8 [shape = 'u8[131072]{0}', space=vmem, size = 0x20000, scoped, tag = 'input window, operand 3, single buffered']
    #allocation9 [shape = 's32[1]{0}', space=sflag, size = 0x4, scoped, tag = 'scoped memory for tpu_custom_call.1']
    #allocation10 [shape = 'u8[4096]{0}', space=vmem, size = 0x1000, scoped, tag = 'output window, operand 0, single buffered']
    %10 = vsyncpa [#allocation3], 0
    %11 = vsyncpa [#allocation6], 0
    %12 = vsyncpa [#allocation9], 0
    %13 = vsyncpa [#allocation4], 0
    // Predicated region
    $region2: #{tpu_custom_call.1} parent=1 // pred_check
      _
    $region3: #{tpu_custom_call.1} parent=1 // pred_check_branch
      %15 = sbr.rel (0) target = $region5
    $region4: #{tpu_custom_call.1} parent=1 // pred_region
      %17 = vsyncadd [#allocation3], 0
      %s19 = sshll.u32 %s0, 4
      %s20 = int_to_ptr.hbm [resolvable:$true] %s19
      %s21 = sshll.u32 [#allocation2], 4
      %s22 = int_to_ptr.vmem [resolvable:$true] %s21
      %24 = dma.hbm_to_vmem [thread:$0]  %s20, 896, %s22, [#allocation3]
    $region5: #{tpu_custom_call.1} parent=1 // pred_fallthru
      _
    // Predicated region
    $region6: #{tpu_custom_call.1} parent=1 // pred_check
      _
    $region7: #{tpu_custom_call.1} parent=1 // pred_check_branch
      %26 = sbr.rel (0) target = $region9
    $region8: #{tpu_custom_call.1} parent=1 // pred_region
      %28 = vsyncadd [#allocation6], 0
      %s29 = sshll.u32 %s1, 4
      %s30 = int_to_ptr.hbm [resolvable:$true] %s29
      %s31 = sshll.u32 [#allocation5], 4
      %s32 = int_to_ptr.vmem [resolvable:$true] %s31
      %37 = dma.hbm_to_vmem [thread:$0]  %s30, 25088, %s32, [#allocation6], 256, 256, 16
    $region9: #{tpu_custom_call.1} parent=1 // pred_fallthru
      _
    // Predicated region
    $region10: #{tpu_custom_call.1} parent=1 // pred_check
      _
    $region11: #{tpu_custom_call.1} parent=1 // pred_check_branch
      %39 = sbr.rel (0) target = $region13
    $region12: #{tpu_custom_call.1} parent=1 // pred_region
      %41 = vsyncadd [#allocation6], 0
      %s43 = sshll.u32 %s2, 4
      %s44 = int_to_ptr.hbm [resolvable:$true] %s43
      %s45 = sshll.u32 [#allocation7], 4
      %s46 = int_to_ptr.vmem [resolvable:$true] %s45
      %48 = dma.hbm_to_vmem [thread:$0]  %s44, 32, %s46, [#allocation6]
    $region13: #{tpu_custom_call.1} parent=1 // pred_fallthru
      _
    // Predicated region
    $region14: #{tpu_custom_call.1} parent=1 // pred_check
      _
    $region15: #{tpu_custom_call.1} parent=1 // pred_check_branch
      %50 = sbr.rel (0) target = $region17
    $region16: #{tpu_custom_call.1} parent=1 // pred_region
      %52 = vsyncadd [#allocation9], 0
      %s53 = sshll.u32 %s3, 4
      %s54 = int_to_ptr.hbm [resolvable:$true] %s53
      %s55 = sshll.u32 [#allocation8], 4
      %s56 = int_to_ptr.vmem [resolvable:$true] %s55
      %61 = dma.hbm_to_vmem [thread:$0]  %s54, 4096, %s56, [#allocation9], 128, 128, 8
    $region17: #{tpu_custom_call.1} parent=1 // pred_fallthru
      _
    // Predicated region
    $region18: #{tpu_custom_call.1} parent=1 // pred_check
      _
    $region19: #{tpu_custom_call.1} parent=1 // pred_check_branch
      %63 = sbr.rel (0) target = $region21
    $region20: #{tpu_custom_call.1} parent=1 // pred_region
      _
    $region21: #{tpu_custom_call.1} parent=1 // pred_fallthru
      _
    // Predicated region
    $region22: #{tpu_custom_call.1} parent=1 // pred_check
      _
    $region23: #{tpu_custom_call.1} parent=1 // pred_check_branch
      %65 = sbr.rel (0) target = $region25
    $region24: #{tpu_custom_call.1} parent=1 // pred_region
      %67 = dma.done [#allocation3], 896
    $region25: #{tpu_custom_call.1} parent=1 // pred_fallthru
      _
    // Predicated region
    $region26: #{tpu_custom_call.1} parent=1 // pred_check
      _
    $region27: #{tpu_custom_call.1} parent=1 // pred_check_branch
      %69 = sbr.rel (0) target = $region29
    $region28: #{tpu_custom_call.1} parent=1 // pred_region
      %71 = dma.done [#allocation6], 25088
    $region29: #{tpu_custom_call.1} parent=1 // pred_fallthru
      _
    // Predicated region
    $region30: #{tpu_custom_call.1} parent=1 // pred_check
      _
    $region31: #{tpu_custom_call.1} parent=1 // pred_check_branch
      %73 = sbr.rel (0) target = $region33
    $region32: #{tpu_custom_call.1} parent=1 // pred_region
      %75 = dma.done [#allocation6], 32
    $region33: #{tpu_custom_call.1} parent=1 // pred_fallthru
      _
    // Predicated region
    $region34: #{tpu_custom_call.1} parent=1 // pred_check
      _
    $region35: #{tpu_custom_call.1} parent=1 // pred_check_branch
      %77 = sbr.rel (0) target = $region37
    $region36: #{tpu_custom_call.1} parent=1 // pred_region
      %79 = dma.done [#allocation9], 4096
    $region37: #{tpu_custom_call.1} parent=1 // pred_fallthru
      _
    %v80 = vld [vmem:[#allocation2] sm:$0xff]
    %v81 = vld [vmem:[#allocation2 + $0x8] sm:$0xff]
    %v82 = vld [vmem:[#allocation2 + $0x10] sm:$0xff]
    %v83 = vld [vmem:[#allocation2 + $0x18] sm:$0xff]
    %v84 = vld [vmem:[#allocation2 + $0x20] sm:$0xff]
    %v85 = vld [vmem:[#allocation2 + $0x28] sm:$0xff]
    %v86 = vld [vmem:[#allocation2 + $0x30] sm:$0xff]
    %v87 = vld [vmem:[#allocation5] sm:$0xff]
    %v88 = vld [vmem:[#allocation5 + $0x8] sm:$0xff]
    %v89 = vld [vmem:[#allocation5 + $0x10] sm:$0xff]
    %v90 = vld [vmem:[#allocation5 + $0x18] sm:$0xff]
    %v91 = vld [vmem:[#allocation5 + $0x20] sm:$0xff]
    %v92 = vld [vmem:[#allocation5 + $0x28] sm:$0xff]
    %v93 = vld [vmem:[#allocation5 + $0x30] sm:$0xff]
    %v94 = vld [vmem:[#allocation5 + $0x38] sm:$0xff]
    %v95 = vld [vmem:[#allocation5 + $0x40] sm:$0xff]
    %v96 = vld [vmem:[#allocation5 + $0x48] sm:$0xff]
    %v97 = vld [vmem:[#allocation5 + $0x50] sm:$0xff]
    %v98 = vld [vmem:[#allocation5 + $0x58] sm:$0xff]
    %v99 = vld [vmem:[#allocation5 + $0x60] sm:$0xff]
    %v100 = vld [vmem:[#allocation5 + $0x68] sm:$0xff]
    %v101 = vld [vmem:[#allocation5 + $0x70] sm:$0xff]
    %v102 = vld [vmem:[#allocation5 + $0x78] sm:$0xff]
    %v103 = vld [vmem:[#allocation5 + $0x80] sm:$0xff]
    %v104 = vld [vmem:[#allocation5 + $0x88] sm:$0xff]
    %v105 = vld [vmem:[#allocation5 + $0x90] sm:$0xff]
    %v106 = vld [vmem:[#allocation5 + $0x98] sm:$0xff]
    %v107 = vld [vmem:[#allocation5 + $0xa0] sm:$0xff]
    %v108 = vld [vmem:[#allocation5 + $0xa8] sm:$0xff]
    %v109 = vld [vmem:[#allocation5 + $0xb0] sm:$0xff]
    %v110 = vld [vmem:[#allocation5 + $0xb8] sm:$0xff]
    %v111 = vld [vmem:[#allocation5 + $0xc0] sm:$0xff]
    %v112 = vld [vmem:[#allocation5 + $0xc8] sm:$0xff]
    %v113 = vld [vmem:[#allocation5 + $0xd0] sm:$0xff]
    %v114 = vld [vmem:[#allocation5 + $0xd8] sm:$0xff]
    %v115 = vld [vmem:[#allocation5 + $0xe0] sm:$0xff]
    %v116 = vld [vmem:[#allocation5 + $0xe8] sm:$0xff]
    %v117 = vld [vmem:[#allocation5 + $0xf0] sm:$0xff]
    %v118 = vld [vmem:[#allocation5 + $0xf8] sm:$0xff]
    %v119 = vld [vmem:[#allocation5 + $0x100] sm:$0xff]
    %v120 = vld [vmem:[#allocation5 + $0x108] sm:$0xff]
    %v121 = vld [vmem:[#allocation5 + $0x110] sm:$0xff]
    %v122 = vld [vmem:[#allocation5 + $0x118] sm:$0xff]
    %v123 = vld [vmem:[#allocation5 + $0x120] sm:$0xff]
    %v124 = vld [vmem:[#allocation5 + $0x128] sm:$0xff]
    %v125 = vld [vmem:[#allocation5 + $0x130] sm:$0xff]
    %v126 = vld [vmem:[#allocation5 + $0x138] sm:$0xff]
    %v127 = vld [vmem:[#allocation5 + $0x140] sm:$0xff]
    %v128 = vld [vmem:[#allocation5 + $0x148] sm:$0xff]
    %v129 = vld [vmem:[#allocation5 + $0x150] sm:$0xff]
    %v130 = vld [vmem:[#allocation5 + $0x158] sm:$0xff]
    %v131 = vld [vmem:[#allocation5 + $0x160] sm:$0xff]
    %v132 = vld [vmem:[#allocation5 + $0x168] sm:$0xff]
    %v133 = vld [vmem:[#allocation5 + $0x170] sm:$0xff]
    %v134 = vld [vmem:[#allocation5 + $0x178] sm:$0xff]
    %v135 = vld [vmem:[#allocation5 + $0x180] sm:$0xff]
    %v136 = vld [vmem:[#allocation5 + $0x188] sm:$0xff]
    %v137 = vld [vmem:[#allocation5 + $0x190] sm:$0xff]
    %v138 = vld [vmem:[#allocation5 + $0x198] sm:$0xff]
    %v139 = vld [vmem:[#allocation5 + $0x1a0] sm:$0xff]
    %v140 = vld [vmem:[#allocation5 + $0x1a8] sm:$0xff]
    %v141 = vld [vmem:[#allocation5 + $0x1b0] sm:$0xff]
    %v142 = vld [vmem:[#allocation5 + $0x1b8] sm:$0xff]
    %v143 = vld [vmem:[#allocation5 + $0x1c0] sm:$0xff]
    %v144 = vld [vmem:[#allocation5 + $0x1c8] sm:$0xff]
    %v145 = vld [vmem:[#allocation5 + $0x1d0] sm:$0xff]
    %v146 = vld [vmem:[#allocation5 + $0x1d8] sm:$0xff]
    %v147 = vld [vmem:[#allocation5 + $0x1e0] sm:$0xff]
    %v148 = vld [vmem:[#allocation5 + $0x1e8] sm:$0xff]
    %v149 = vld [vmem:[#allocation5 + $0x1f0] sm:$0xff]
    %v150 = vld [vmem:[#allocation5 + $0x1f8] sm:$0xff]
    %v151 = vld [vmem:[#allocation5 + $0x200] sm:$0xff]
    %v152 = vld [vmem:[#allocation5 + $0x208] sm:$0xff]
    %v153 = vld [vmem:[#allocation5 + $0x210] sm:$0xff]
    %v154 = vld [vmem:[#allocation5 + $0x218] sm:$0xff]
    %v155 = vld [vmem:[#allocation5 + $0x220] sm:$0xff]
    %v156 = vld [vmem:[#allocation5 + $0x228] sm:$0xff]
    %v157 = vld [vmem:[#allocation5 + $0x230] sm:$0xff]
    %v158 = vld [vmem:[#allocation5 + $0x238] sm:$0xff]
    %v159 = vld [vmem:[#allocation5 + $0x240] sm:$0xff]
    %v160 = vld [vmem:[#allocation5 + $0x248] sm:$0xff]
    %v161 = vld [vmem:[#allocation5 + $0x250] sm:$0xff]
    %v162 = vld [vmem:[#allocation5 + $0x258] sm:$0xff]
    %v163 = vld [vmem:[#allocation5 + $0x260] sm:$0xff]
    %v164 = vld [vmem:[#allocation5 + $0x268] sm:$0xff]
    %v165 = vld [vmem:[#allocation5 + $0x270] sm:$0xff]
    %v166 = vld [vmem:[#allocation5 + $0x278] sm:$0xff]
    %v167 = vld [vmem:[#allocation5 + $0x280] sm:$0xff]
    %v168 = vld [vmem:[#allocation5 + $0x288] sm:$0xff]
    %v169 = vld [vmem:[#allocation5 + $0x290] sm:$0xff]
    %v170 = vld [vmem:[#allocation5 + $0x298] sm:$0xff]
    %v171 = vld [vmem:[#allocation5 + $0x2a0] sm:$0xff]
    %v172 = vld [vmem:[#allocation5 + $0x2a8] sm:$0xff]
    %v173 = vld [vmem:[#allocation5 + $0x2b0] sm:$0xff]
    %v174 = vld [vmem:[#allocation5 + $0x2b8] sm:$0xff]
    %v175 = vld [vmem:[#allocation5 + $0x2c0] sm:$0xff]
    %v176 = vld [vmem:[#allocation5 + $0x2c8] sm:$0xff]
    %v177 = vld [vmem:[#allocation5 + $0x2d0] sm:$0xff]
    %v178 = vld [vmem:[#allocation5 + $0x2d8] sm:$0xff]
    %v179 = vld [vmem:[#allocation5 + $0x2e0] sm:$0xff]
    %v180 = vld [vmem:[#allocation5 + $0x2e8] sm:$0xff]
    %v181 = vld [vmem:[#allocation5 + $0x2f0] sm:$0xff]
    %v182 = vld [vmem:[#allocation5 + $0x2f8] sm:$0xff]
    %v183 = vld [vmem:[#allocation5 + $0x300] sm:$0xff]
    %v184 = vld [vmem:[#allocation5 + $0x308] sm:$0xff]
    %v185 = vld [vmem:[#allocation5 + $0x310] sm:$0xff]
    %v186 = vld [vmem:[#allocation5 + $0x318] sm:$0xff]
    %v187 = vld [vmem:[#allocation5 + $0x320] sm:$0xff]
    %v188 = vld [vmem:[#allocation5 + $0x328] sm:$0xff]
    %v189 = vld [vmem:[#allocation5 + $0x330] sm:$0xff]
    %v190 = vld [vmem:[#allocation5 + $0x338] sm:$0xff]
    %v191 = vld [vmem:[#allocation5 + $0x340] sm:$0xff]
    %v192 = vld [vmem:[#allocation5 + $0x348] sm:$0xff]
    %v193 = vld [vmem:[#allocation5 + $0x350] sm:$0xff]
    %v194 = vld [vmem:[#allocation5 + $0x358] sm:$0xff]
    %v195 = vld [vmem:[#allocation5 + $0x360] sm:$0xff]
    %v196 = vld [vmem:[#allocation5 + $0x368] sm:$0xff]
    %v197 = vld [vmem:[#allocation5 + $0x370] sm:$0xff]
    %v198 = vld [vmem:[#allocation5 + $0x378] sm:$0xff]
    %v199 = vld [vmem:[#allocation5 + $0x380] sm:$0xff]
    %v200 = vld [vmem:[#allocation5 + $0x388] sm:$0xff]
    %v201 = vld [vmem:[#allocation5 + $0x390] sm:$0xff]
    %v202 = vld [vmem:[#allocation5 + $0x398] sm:$0xff]
    %v203 = vld [vmem:[#allocation5 + $0x3a0] sm:$0xff]
    %v204 = vld [vmem:[#allocation5 + $0x3a8] sm:$0xff]
    %v205 = vld [vmem:[#allocation5 + $0x3b0] sm:$0xff]
    %v206 = vld [vmem:[#allocation5 + $0x3b8] sm:$0xff]
    %v207 = vld [vmem:[#allocation5 + $0x3c0] sm:$0xff]
    %v208 = vld [vmem:[#allocation5 + $0x3c8] sm:$0xff]
    %v209 = vld [vmem:[#allocation5 + $0x3d0] sm:$0xff]
    %v210 = vld [vmem:[#allocation5 + $0x3d8] sm:$0xff]
    %v211 = vld [vmem:[#allocation5 + $0x3e0] sm:$0xff]
    %v212 = vld [vmem:[#allocation5 + $0x3e8] sm:$0xff]
    %v213 = vld [vmem:[#allocation5 + $0x3f0] sm:$0xff]
    %v214 = vld [vmem:[#allocation5 + $0x3f8] sm:$0xff]
    %v215 = vld [vmem:[#allocation5 + $0x400] sm:$0xff]
    %v216 = vld [vmem:[#allocation5 + $0x408] sm:$0xff]
    %v217 = vld [vmem:[#allocation5 + $0x410] sm:$0xff]
    %v218 = vld [vmem:[#allocation5 + $0x418] sm:$0xff]
    %v219 = vld [vmem:[#allocation5 + $0x420] sm:$0xff]
    %v220 = vld [vmem:[#allocation5 + $0x428] sm:$0xff]
    %v221 = vld [vmem:[#allocation5 + $0x430] sm:$0xff]
    %v222 = vld [vmem:[#allocation5 + $0x438] sm:$0xff]
    %v223 = vld [vmem:[#allocation5 + $0x440] sm:$0xff]
    %v224 = vld [vmem:[#allocation5 + $0x448] sm:$0xff]
    %v225 = vld [vmem:[#allocation5 + $0x450] sm:$0xff]
    %v226 = vld [vmem:[#allocation5 + $0x458] sm:$0xff]
    %v227 = vld [vmem:[#allocation5 + $0x460] sm:$0xff]
    %v228 = vld [vmem:[#allocation5 + $0x468] sm:$0xff]
    %v229 = vld [vmem:[#allocation5 + $0x470] sm:$0xff]
    %v230 = vld [vmem:[#allocation5 + $0x478] sm:$0xff]
    %v231 = vld [vmem:[#allocation5 + $0x480] sm:$0xff]
    %v232 = vld [vmem:[#allocation5 + $0x488] sm:$0xff]
    %v233 = vld [vmem:[#allocation5 + $0x490] sm:$0xff]
    %v234 = vld [vmem:[#allocation5 + $0x498] sm:$0xff]
    %v235 = vld [vmem:[#allocation5 + $0x4a0] sm:$0xff]
    %v236 = vld [vmem:[#allocation5 + $0x4a8] sm:$0xff]
    %v237 = vld [vmem:[#allocation5 + $0x4b0] sm:$0xff]
    %v238 = vld [vmem:[#allocation5 + $0x4b8] sm:$0xff]
    %v239 = vld [vmem:[#allocation5 + $0x4c0] sm:$0xff]
    %v240 = vld [vmem:[#allocation5 + $0x4c8] sm:$0xff]
    %v241 = vld [vmem:[#allocation5 + $0x4d0] sm:$0xff]
    %v242 = vld [vmem:[#allocation5 + $0x4d8] sm:$0xff]
    %v243 = vld [vmem:[#allocation5 + $0x4e0] sm:$0xff]
    %v244 = vld [vmem:[#allocation5 + $0x4e8] sm:$0xff]
    %v245 = vld [vmem:[#allocation5 + $0x4f0] sm:$0xff]
    %v246 = vld [vmem:[#allocation5 + $0x4f8] sm:$0xff]
    %v247 = vld [vmem:[#allocation5 + $0x500] sm:$0xff]
    %v248 = vld [vmem:[#allocation5 + $0x508] sm:$0xff]
    %v249 = vld [vmem:[#allocation5 + $0x510] sm:$0xff]
    %v250 = vld [vmem:[#allocation5 + $0x518] sm:$0xff]
    %v251 = vld [vmem:[#allocation5 + $0x520] sm:$0xff]
    %v252 = vld [vmem:[#allocation5 + $0x528] sm:$0xff]
    %v253 = vld [vmem:[#allocation5 + $0x530] sm:$0xff]
    %v254 = vld [vmem:[#allocation5 + $0x538] sm:$0xff]
    %v255 = vld [vmem:[#allocation5 + $0x540] sm:$0xff]
    %v256 = vld [vmem:[#allocation5 + $0x548] sm:$0xff]
    %v257 = vld [vmem:[#allocation5 + $0x550] sm:$0xff]
    %v258 = vld [vmem:[#allocation5 + $0x558] sm:$0xff]
    %v259 = vld [vmem:[#allocation5 + $0x560] sm:$0xff]
    %v260 = vld [vmem:[#allocation5 + $0x568] sm:$0xff]
    %v261 = vld [vmem:[#allocation5 + $0x570] sm:$0xff]
    %v262 = vld [vmem:[#allocation5 + $0x578] sm:$0xff]
    %v263 = vld [vmem:[#allocation5 + $0x580] sm:$0xff]
    %v264 = vld [vmem:[#allocation5 + $0x588] sm:$0xff]
    %v265 = vld [vmem:[#allocation5 + $0x590] sm:$0xff]
    %v266 = vld [vmem:[#allocation5 + $0x598] sm:$0xff]
    %v267 = vld [vmem:[#allocation5 + $0x5a0] sm:$0xff]
    %v268 = vld [vmem:[#allocation5 + $0x5a8] sm:$0xff]
    %v269 = vld [vmem:[#allocation5 + $0x5b0] sm:$0xff]
    %v270 = vld [vmem:[#allocation5 + $0x5b8] sm:$0xff]
    %v271 = vld [vmem:[#allocation5 + $0x5c0] sm:$0xff]
    %v272 = vld [vmem:[#allocation5 + $0x5c8] sm:$0xff]
    %v273 = vld [vmem:[#allocation5 + $0x5d0] sm:$0xff]
    %v274 = vld [vmem:[#allocation5 + $0x5d8] sm:$0xff]
    %v275 = vld [vmem:[#allocation5 + $0x5e0] sm:$0xff]
    %v276 = vld [vmem:[#allocation5 + $0x5e8] sm:$0xff]
    %v277 = vld [vmem:[#allocation5 + $0x5f0] sm:$0xff]
    %v278 = vld [vmem:[#allocation5 + $0x5f8] sm:$0xff]
    %v279 = vld [vmem:[#allocation5 + $0x600] sm:$0xff]
    %v280 = vld [vmem:[#allocation5 + $0x608] sm:$0xff]
    %v281 = vld [vmem:[#allocation5 + $0x610] sm:$0xff]
    %v282 = vld [vmem:[#allocation5 + $0x618] sm:$0xff]
    %v283 = vld [vmem:[#allocation7] sm:$0x3]
    %v285 = vperm.slane %v283, 0
    %v286 = vperm.slane %v283, 1
    %vm289 = vcmask 130048
    %v291 = vsel %vm289, %v86, 0
    %293 = vmatpush.msra.mxu0 %v117
    %294 = vmatpush.msra.mxu0 %v115
    %295 = vmatpush.msra.mxu0 %v113
    %296 = vmatpush.msra.mxu0 %v111
    %297 = vmatpush.msra.mxu0 %v109
    %298 = vmatpush.msra.mxu0 %v107
    %299 = vmatpush.msra.mxu0 %v105
    %300 = vmatpush.msra.mxu0 %v103
    %301 = vmatpush.msra.mxu0 %v101
    %302 = vmatpush.msra.mxu0 %v99
    %303 = vmatpush.msra.mxu0 %v97
    %304 = vmatpush.msra.mxu0 %v95
    %305 = vmatpush.msra.mxu0 %v93
    %306 = vmatpush.msra.mxu0 %v91
    %307 = vmatpush.msra.mxu0 %v89
    %308 = vmatpush.msra.mxu0 %v87
    %309 = vmatmul.f32.gmra.mxu0 %v80
    %v310 = vpop.f32.mrf.mxu0
    %v311 = vadd.f32 %v285, %v310
    %312 = vdwg.mxu0
    %313 = vmatpush.msra.mxu0 %v149
    %314 = vmatpush.msra.mxu0 %v147
    %315 = vmatpush.msra.mxu0 %v145
    %316 = vmatpush.msra.mxu0 %v143
    %317 = vmatpush.msra.mxu0 %v141
    %318 = vmatpush.msra.mxu0 %v139
    %319 = vmatpush.msra.mxu0 %v137
    %320 = vmatpush.msra.mxu0 %v135
    %321 = vmatpush.msra.mxu0 %v133
    %322 = vmatpush.msra.mxu0 %v131
    %323 = vmatpush.msra.mxu0 %v129
    %324 = vmatpush.msra.mxu0 %v127
    %325 = vmatpush.msra.mxu0 %v125
    %326 = vmatpush.msra.mxu0 %v123
    %327 = vmatpush.msra.mxu0 %v121
    %328 = vmatpush.msra.mxu0 %v119
    %329 = vmatmul.f32.gmra.mxu0 %v81
    %v330 = vpop.f32.mrf.mxu0
    %v331 = vadd.f32 %v311, %v330
    %332 = vdwg.mxu0
    %333 = vmatpush.msra.mxu0 %v181
    %334 = vmatpush.msra.mxu0 %v179
    %335 = vmatpush.msra.mxu0 %v177
    %336 = vmatpush.msra.mxu0 %v175
    %337 = vmatpush.msra.mxu0 %v173
    %338 = vmatpush.msra.mxu0 %v171
    %339 = vmatpush.msra.mxu0 %v169
    %340 = vmatpush.msra.mxu0 %v167
    %341 = vmatpush.msra.mxu0 %v165
    %342 = vmatpush.msra.mxu0 %v163
    %343 = vmatpush.msra.mxu0 %v161
    %344 = vmatpush.msra.mxu0 %v159
    %345 = vmatpush.msra.mxu0 %v157
    %346 = vmatpush.msra.mxu0 %v155
    %347 = vmatpush.msra.mxu0 %v153
    %348 = vmatpush.msra.mxu0 %v151
    %349 = vmatmul.f32.gmra.mxu0 %v82
    %v350 = vpop.f32.mrf.mxu0
    %v351 = vadd.f32 %v331, %v350
    %352 = vdwg.mxu0
    %353 = vmatpush.msra.mxu0 %v213
    %354 = vmatpush.msra.mxu0 %v211
    %355 = vmatpush.msra.mxu0 %v209
    %356 = vmatpush.msra.mxu0 %v207
    %357 = vmatpush.msra.mxu0 %v205
    %358 = vmatpush.msra.mxu0 %v203
    %359 = vmatpush.msra.mxu0 %v201
    %360 = vmatpush.msra.mxu0 %v199
    %361 = vmatpush.msra.mxu0 %v197
    %362 = vmatpush.msra.mxu0 %v195
    %363 = vmatpush.msra.mxu0 %v193
    %364 = vmatpush.msra.mxu0 %v191
    %365 = vmatpush.msra.mxu0 %v189
    %366 = vmatpush.msra.mxu0 %v187
    %367 = vmatpush.msra.mxu0 %v185
    %368 = vmatpush.msra.mxu0 %v183
    %369 = vmatmul.f32.gmra.mxu0 %v83
    %v370 = vpop.f32.mrf.mxu0
    %v371 = vadd.f32 %v351, %v370
    %372 = vdwg.mxu0
    %373 = vmatpush.msra.mxu0 %v245
    %374 = vmatpush.msra.mxu0 %v243
    %375 = vmatpush.msra.mxu0 %v241
    %376 = vmatpush.msra.mxu0 %v239
    %377 = vmatpush.msra.mxu0 %v237
    %378 = vmatpush.msra.mxu0 %v235
    %379 = vmatpush.msra.mxu0 %v233
    %380 = vmatpush.msra.mxu0 %v231
    %381 = vmatpush.msra.mxu0 %v229
    %382 = vmatpush.msra.mxu0 %v227
    %383 = vmatpush.msra.mxu0 %v225
    %384 = vmatpush.msra.mxu0 %v223
    %385 = vmatpush.msra.mxu0 %v221
    %386 = vmatpush.msra.mxu0 %v219
    %387 = vmatpush.msra.mxu0 %v217
    %388 = vmatpush.msra.mxu0 %v215
    %389 = vmatmul.f32.gmra.mxu0 %v84
    %v390 = vpop.f32.mrf.mxu0
    %v391 = vadd.f32 %v371, %v390
    %392 = vdwg.mxu0
    %393 = vmatpush.msra.mxu0 %v277
    %394 = vmatpush.msra.mxu0 %v275
    %395 = vmatpush.msra.mxu0 %v273
    %396 = vmatpush.msra.mxu0 %v271
    %397 = vmatpush.msra.mxu0 %v269
    %398 = vmatpush.msra.mxu0 %v267
    %399 = vmatpush.msra.mxu0 %v265
    %400 = vmatpush.msra.mxu0 %v263
    %401 = vmatpush.msra.mxu0 %v261
    %402 = vmatpush.msra.mxu0 %v259
    %403 = vmatpush.msra.mxu0 %v257
    %404 = vmatpush.msra.mxu0 %v255
    %405 = vmatpush.msra.mxu0 %v253
    %406 = vmatpush.msra.mxu0 %v251
    %407 = vmatpush.msra.mxu0 %v249
    %408 = vmatpush.msra.mxu0 %v247
    %409 = vmatmul.f32.gmra.mxu0 %v85
    %v410 = vpop.f32.mrf.mxu0
    %v411 = vadd.f32 %v391, %v410
    %412 = vdwg.mxu0
    %413 = vmatpush.msra.mxu0 0.0
    %414 = vmatpush.msra.mxu0 0.0
    %415 = vmatpush.msra.mxu0 0.0
    %416 = vmatpush.msra.mxu0 0.0
    %417 = vmatpush.msra.mxu0 0.0
    %418 = vmatpush.msra.mxu0 0.0
    %419 = vmatpush.msra.mxu0 0.0
    %420 = vmatpush.msra.mxu0 0.0
    %421 = vmatpush.msra.mxu0 0.0
    %422 = vmatpush.msra.mxu0 0.0
    %423 = vmatpush.msra.mxu0 0.0
    %424 = vmatpush.msra.mxu0 0.0
    %425 = vmatpush.msra.mxu0 0.0
    %426 = vmatpush.msra.mxu0 0.0
    %427 = vmatpush.msra.mxu0 %v281
    %428 = vmatpush.msra.mxu0 %v279
    %429 = vmatmul.f32.gmra.mxu0 %v291
    %v430 = vpop.f32.mrf.mxu0
    %v431 = vadd.f32 %v411, %v430
    %432 = vdwg.mxu0
    %433 = vmatpush.msra.mxu0 %v118
    %434 = vmatpush.msra.mxu0 %v116
    %435 = vmatpush.msra.mxu0 %v114
    %436 = vmatpush.msra.mxu0 %v112
    %437 = vmatpush.msra.mxu0 %v110
    %438 = vmatpush.msra.mxu0 %v108
    %439 = vmatpush.msra.mxu0 %v106
    %440 = vmatpush.msra.mxu0 %v104
    %441 = vmatpush.msra.mxu0 %v102
    %442 = vmatpush.msra.mxu0 %v100
    %443 = vmatpush.msra.mxu0 %v98
    %444 = vmatpush.msra.mxu0 %v96
    %445 = vmatpush.msra.mxu0 %v94
    %446 = vmatpush.msra.mxu0 %v92
    %447 = vmatpush.msra.mxu0 %v90
    %448 = vmatpush.msra.mxu0 %v88
    %449 = vmatmul.f32.gmra.mxu0 %v80
    %v450 = vpop.f32.mrf.mxu0
    %v451 = vadd.f32 %v286, %v450
    %452 = vdwg.mxu0
    %453 = vmatpush.msra.mxu0 %v150
    %454 = vmatpush.msra.mxu0 %v148
    %455 = vmatpush.msra.mxu0 %v146
    %456 = vmatpush.msra.mxu0 %v144
    %457 = vmatpush.msra.mxu0 %v142
    %458 = vmatpush.msra.mxu0 %v140
    %459 = vmatpush.msra.mxu0 %v138
    %460 = vmatpush.msra.mxu0 %v136
    %461 = vmatpush.msra.mxu0 %v134
    %462 = vmatpush.msra.mxu0 %v132
    %463 = vmatpush.msra.mxu0 %v130
    %464 = vmatpush.msra.mxu0 %v128
    %465 = vmatpush.msra.mxu0 %v126
    %466 = vmatpush.msra.mxu0 %v124
    %467 = vmatpush.msra.mxu0 %v122
    %468 = vmatpush.msra.mxu0 %v120
    %469 = vmatmul.f32.gmra.mxu0 %v81
    %v470 = vpop.f32.mrf.mxu0
    %v471 = vadd.f32 %v451, %v470
    %472 = vdwg.mxu0
    %473 = vmatpush.msra.mxu0 %v182
    %474 = vmatpush.msra.mxu0 %v180
    %475 = vmatpush.msra.mxu0 %v178
    %476 = vmatpush.msra.mxu0 %v176
    %477 = vmatpush.msra.mxu0 %v174
    %478 = vmatpush.msra.mxu0 %v172
    %479 = vmatpush.msra.mxu0 %v170
    %480 = vmatpush.msra.mxu0 %v168
    %481 = vmatpush.msra.mxu0 %v166
    %482 = vmatpush.msra.mxu0 %v164
    %483 = vmatpush.msra.mxu0 %v162
    %484 = vmatpush.msra.mxu0 %v160
    %485 = vmatpush.msra.mxu0 %v158
    %486 = vmatpush.msra.mxu0 %v156
    %487 = vmatpush.msra.mxu0 %v154
    %488 = vmatpush.msra.mxu0 %v152
    %489 = vmatmul.f32.gmra.mxu0 %v82
    %v490 = vpop.f32.mrf.mxu0
    %v491 = vadd.f32 %v471, %v490
    %492 = vdwg.mxu0
    %493 = vmatpush.msra.mxu0 %v214
    %494 = vmatpush.msra.mxu0 %v212
    %495 = vmatpush.msra.mxu0 %v210
    %496 = vmatpush.msra.mxu0 %v208
    %497 = vmatpush.msra.mxu0 %v206
    %498 = vmatpush.msra.mxu0 %v204
    %499 = vmatpush.msra.mxu0 %v202
    %500 = vmatpush.msra.mxu0 %v200
    %501 = vmatpush.msra.mxu0 %v198
    %502 = vmatpush.msra.mxu0 %v196
    %503 = vmatpush.msra.mxu0 %v194
    %504 = vmatpush.msra.mxu0 %v192
    %505 = vmatpush.msra.mxu0 %v190
    %506 = vmatpush.msra.mxu0 %v188
    %507 = vmatpush.msra.mxu0 %v186
    %508 = vmatpush.msra.mxu0 %v184
    %509 = vmatmul.f32.gmra.mxu0 %v83
    %v510 = vpop.f32.mrf.mxu0
    %v511 = vadd.f32 %v491, %v510
    %512 = vdwg.mxu0
    %513 = vmatpush.msra.mxu0 %v246
    %514 = vmatpush.msra.mxu0 %v244
    %515 = vmatpush.msra.mxu0 %v242
    %516 = vmatpush.msra.mxu0 %v240
    %517 = vmatpush.msra.mxu0 %v238
    %518 = vmatpush.msra.mxu0 %v236
    %519 = vmatpush.msra.mxu0 %v234
    %520 = vmatpush.msra.mxu0 %v232
    %521 = vmatpush.msra.mxu0 %v230
    %522 = vmatpush.msra.mxu0 %v228
    %523 = vmatpush.msra.mxu0 %v226
    %524 = vmatpush.msra.mxu0 %v224
    %525 = vmatpush.msra.mxu0 %v222
    %526 = vmatpush.msra.mxu0 %v220
    %527 = vmatpush.msra.mxu0 %v218
    %528 = vmatpush.msra.mxu0 %v216
    %529 = vmatmul.f32.gmra.mxu0 %v84
    %v530 = vpop.f32.mrf.mxu0
    %v531 = vadd.f32 %v511, %v530
    %532 = vdwg.mxu0
    %533 = vmatpush.msra.mxu0 %v278
    %534 = vmatpush.msra.mxu0 %v276
    %535 = vmatpush.msra.mxu0 %v274
    %536 = vmatpush.msra.mxu0 %v272
    %537 = vmatpush.msra.mxu0 %v270
    %538 = vmatpush.msra.mxu0 %v268
    %539 = vmatpush.msra.mxu0 %v266
    %540 = vmatpush.msra.mxu0 %v264
    %541 = vmatpush.msra.mxu0 %v262
    %542 = vmatpush.msra.mxu0 %v260
    %543 = vmatpush.msra.mxu0 %v258
    %544 = vmatpush.msra.mxu0 %v256
    %545 = vmatpush.msra.mxu0 %v254
    %546 = vmatpush.msra.mxu0 %v252
    %547 = vmatpush.msra.mxu0 %v250
    %548 = vmatpush.msra.mxu0 %v248
    %549 = vmatmul.f32.gmra.mxu0 %v85
    %v550 = vpop.f32.mrf.mxu0
    %v551 = vadd.f32 %v531, %v550
    %552 = vdwg.mxu0
    %553 = vmatpush.msra.mxu0 0.0
    %554 = vmatpush.msra.mxu0 0.0
    %555 = vmatpush.msra.mxu0 0.0
    %556 = vmatpush.msra.mxu0 0.0
    %557 = vmatpush.msra.mxu0 0.0
    %558 = vmatpush.msra.mxu0 0.0
    %559 = vmatpush.msra.mxu0 0.0
    %560 = vmatpush.msra.mxu0 0.0
    %561 = vmatpush.msra.mxu0 0.0
    %562 = vmatpush.msra.mxu0 0.0
    %563 = vmatpush.msra.mxu0 0.0
    %564 = vmatpush.msra.mxu0 0.0
    %565 = vmatpush.msra.mxu0 0.0
    %566 = vmatpush.msra.mxu0 0.0
    %567 = vmatpush.msra.mxu0 %v282
    %568 = vmatpush.msra.mxu0 %v280
    %569 = vmatmul.f32.gmra.mxu0 %v291
    %v570 = vpop.f32.mrf.mxu0
    %v571 = vadd.f32 %v551, %v570
    %572 = vdwg.mxu0
    %v573 = vxor.u32 %v431, 2147483648
    %v574 = vxor.u32 %v571, 2147483648
    %v575 = vmul.f32 %v573, 1.442695
    %v576 = vpow.pop %v575
    %v577 = vmul.f32 %v574, 1.442695
    %v578 = vpow.pop %v577
    %v579 = vadd.f32 %v576, 1.0
    %v580 = vadd.f32 %v578, 1.0
    %v581 = vrcp.pop %v579
    %v582 = vmul.f32 %v579, %v581
    %v583 = vsub.f32 1.0, %v582
    %v584 = vmul.f32 %v581, %v583
    %v585 = vadd.f32 %v581, %v584
    %vm586 = vweird.f32 %v579
    %vm587 = vweird.f32 %v581
    %vm588 = vmor %vm586, %vm587
    %v589 = vsel %vm588, %v581, %v585
    %v590 = vand.u32 2147483647, %v579
    %vm591 = vcmp.eq.f32.partialorder %v590, 8.507059e+37
    %v592 = vand.u32 %v579, 2147483648
    %v593 = vor.u32 1.1754944e-38, %v592
    %v594 = vsel %vm591, %v593, %v589
    %v595 = vmul.f32 1.0, %v594
    %v596 = vrcp.pop %v580
    %v597 = vmul.f32 %v580, %v596
    %v598 = vsub.f32 1.0, %v597
    %v599 = vmul.f32 %v596, %v598
    %v600 = vadd.f32 %v596, %v599
    %vm601 = vweird.f32 %v580
    %vm602 = vweird.f32 %v596
    %vm603 = vmor %vm601, %vm602
    %v604 = vsel %vm603, %v596, %v600
    %v605 = vand.u32 2147483647, %v580
    %vm606 = vcmp.eq.f32.partialorder %v605, 8.507059e+37
    %v607 = vand.u32 %v580, 2147483648
    %v608 = vor.u32 1.1754944e-38, %v607
    %v609 = vsel %vm606, %v608, %v604
    %v610 = vmul.f32 1.0, %v609
    %v611 = vld [vmem:[#allocation8] sm:$0xff]
    %v612 = vld [vmem:[#allocation8 + $0x8] sm:$0xff]
    %v613 = vld [vmem:[#allocation8 + $0x10] sm:$0xff]
    %v614 = vld [vmem:[#allocation8 + $0x18] sm:$0xff]
    %v615 = vld [vmem:[#allocation8 + $0x20] sm:$0xff]
    %v616 = vld [vmem:[#allocation8 + $0x28] sm:$0xff]
    %v617 = vld [vmem:[#allocation8 + $0x30] sm:$0xff]
    %v618 = vld [vmem:[#allocation8 + $0x38] sm:$0xff]
    %v619 = vld [vmem:[#allocation8 + $0x40] sm:$0xff]
    %v620 = vld [vmem:[#allocation8 + $0x48] sm:$0xff]
    %v621 = vld [vmem:[#allocation8 + $0x50] sm:$0xff]
    %v622 = vld [vmem:[#allocation8 + $0x58] sm:$0xff]
    %v623 = vld [vmem:[#allocation8 + $0x60] sm:$0xff]
    %v624 = vld [vmem:[#allocation8 + $0x68] sm:$0xff]
    %v625 = vld [vmem:[#allocation8 + $0x70] sm:$0xff]
    %v626 = vld [vmem:[#allocation8 + $0x78] sm:$0xff]
    %v627 = vld [vmem:[#allocation8 + $0x80] sm:$0xff]
    %v628 = vld [vmem:[#allocation8 + $0x88] sm:$0xff]
    %v629 = vld [vmem:[#allocation8 + $0x90] sm:$0xff]
    %v630 = vld [vmem:[#allocation8 + $0x98] sm:$0xff]
    %v631 = vld [vmem:[#allocation8 + $0xa0] sm:$0xff]
    %v632 = vld [vmem:[#allocation8 + $0xa8] sm:$0xff]
    %v633 = vld [vmem:[#allocation8 + $0xb0] sm:$0xff]
    %v634 = vld [vmem:[#allocation8 + $0xb8] sm:$0xff]
    %v635 = vld [vmem:[#allocation8 + $0xc0] sm:$0xff]
    %v636 = vld [vmem:[#allocation8 + $0xc8] sm:$0xff]
    %v637 = vld [vmem:[#allocation8 + $0xd0] sm:$0xff]
    %v638 = vld [vmem:[#allocation8 + $0xd8] sm:$0xff]
    %v639 = vld [vmem:[#allocation8 + $0xe0] sm:$0xff]
    %v640 = vld [vmem:[#allocation8 + $0xe8] sm:$0xff]
    %v641 = vld [vmem:[#allocation8 + $0xf0] sm:$0xff]
    %v642 = vld [vmem:[#allocation8 + $0xf8] sm:$0xff]
    %v643 = vld [vmem:[%s4] sm:$0x1]
    %v645 = vperm.slane %v643, 0
    %647 = vmatpush.msra.mxu0 %v626
    %648 = vmatpush.msra.mxu0 %v625
    %649 = vmatpush.msra.mxu0 %v624
    %650 = vmatpush.msra.mxu0 %v623
    %651 = vmatpush.msra.mxu0 %v622
    %652 = vmatpush.msra.mxu0 %v621
    %653 = vmatpush.msra.mxu0 %v620
    %654 = vmatpush.msra.mxu0 %v619
    %655 = vmatpush.msra.mxu0 %v618
    %656 = vmatpush.msra.mxu0 %v617
    %657 = vmatpush.msra.mxu0 %v616
    %658 = vmatpush.msra.mxu0 %v615
    %659 = vmatpush.msra.mxu0 %v614
    %660 = vmatpush.msra.mxu0 %v613
    %661 = vmatpush.msra.mxu0 %v612
    %662 = vmatpush.msra.mxu0 %v611
    %663 = vmatmul.f32.gmra.mxu0 %v595
    %v664 = vpop.f32.mrf.mxu0
    %v665 = vadd.f32 %v645, %v664
    %666 = vdwg.mxu0
    %667 = vmatpush.msra.mxu0 %v642
    %668 = vmatpush.msra.mxu0 %v641
    %669 = vmatpush.msra.mxu0 %v640
    %670 = vmatpush.msra.mxu0 %v639
    %671 = vmatpush.msra.mxu0 %v638
    %672 = vmatpush.msra.mxu0 %v637
    %673 = vmatpush.msra.mxu0 %v636
    %674 = vmatpush.msra.mxu0 %v635
    %675 = vmatpush.msra.mxu0 %v634
    %676 = vmatpush.msra.mxu0 %v633
    %677 = vmatpush.msra.mxu0 %v632
    %678 = vmatpush.msra.mxu0 %v631
    %679 = vmatpush.msra.mxu0 %v630
    %680 = vmatpush.msra.mxu0 %v629
    %681 = vmatpush.msra.mxu0 %v628
    %682 = vmatpush.msra.mxu0 %v627
    %683 = vmatmul.f32.gmra.mxu0 %v610
    %v684 = vpop.f32.mrf.mxu0
    %v685 = vadd.f32 %v665, %v684
    %686 = vdwg.mxu0
    %687 = vmax.xlane.f32.xlu0 %v685
    %v688 = vpop.xlane.xlu0 %687
    %v689 = vsub.f32 %v685, %v688
    %v690 = vmul.f32 %v689, 1.442695
    %v691 = vpow.pop %v690
    %692 = vadd.xlane.f32.xlu0 %v691
    %v693 = vpop.xlane.xlu0 %692
    %v694 = vrcp.pop %v693
    %v695 = vmul.f32 %v693, %v694
    %v696 = vsub.f32 1.0, %v695
    %v697 = vmul.f32 %v694, %v696
    %v698 = vadd.f32 %v694, %v697
    %vm699 = vweird.f32 %v693
    %vm700 = vweird.f32 %v694
    %vm701 = vmor %vm699, %vm700
    %v702 = vsel %vm701, %v694, %v698
    %v703 = vand.u32 2147483647, %v693
    %vm704 = vcmp.eq.f32.partialorder %v703, 8.507059e+37
    %v705 = vand.u32 %v693, 2147483648
    %v706 = vor.u32 1.1754944e-38, %v705
    %v707 = vsel %vm704, %v706, %v702
    %v708 = vmul.f32 %v691, %v707
    %709 = vst [vmem:[#allocation10] sm:$0xff] %v708
    // Predicated region
    $region38: #{tpu_custom_call.1} parent=1 // pred_check
      _
    $region39: #{tpu_custom_call.1} parent=1 // pred_check_branch
      %711 = sbr.rel (0) target = $region41
    $region40: #{tpu_custom_call.1} parent=1 // pred_region
      %713 = vsyncadd [#allocation4], 0
      %s715 = sshll.u32 [#allocation10], 4
      %s716 = int_to_ptr.vmem [resolvable:$true] %s715
      %s717 = sshll.u32 %s5, 4
      %s718 = int_to_ptr.hbm [resolvable:$true] %s717
      %720 = dma.vmem_to_hbm [thread:$0]  %s716, 128, %s718, [#allocation4]
    $region41: #{tpu_custom_call.1} parent=1 // pred_fallthru
      _
    // Predicated region
    $region42: #{tpu_custom_call.1} parent=1 // pred_check
      _
    $region43: #{tpu_custom_call.1} parent=1 // pred_check_branch
      %722 = sbr.rel (0) target = $region45
    $region44: #{tpu_custom_call.1} parent=1 // pred_region
      %724 = dma.done [#allocation4], 128
    $region45: #{tpu_custom_call.1} parent=1 // pred_fallthru
      _
    %725 = vsyncpa [#allocation3], 1
    %726 = vsyncpa [#allocation6], 1
    %727 = vsyncpa [#allocation9], 1
    %728 = vsyncpa [#allocation4], 1

</llo_original>
